<compile_context>
chip_gen: v7x
topology: tpu7x:2x2x1
jax: 0.10.0
libtpu: 0.0.40
codegen_flags: <defaults>
</compile_context>

<pallas_src>
import functools

import jax
import jax.numpy as jnp
from jax import lax
from jax.experimental import pallas as pl
from jax.experimental.pallas import tpu as pltpu


def _round_up(x, m):
    return (x + m - 1) // m * m


def _bert_output_kernel(x_ref, w_ref, b_ref, res_ref, gamma_ref, beta_ref,
                        out_ref, *, eps, inv_hidden):
    # Dense: [tile_m, I] @ [I, H] -> [tile_m, H] on the MXU, f32 accumulation.
    h = jnp.dot(x_ref[...], w_ref[...], preferred_element_type=jnp.float32)
    h = h + b_ref[...].astype(jnp.float32)          # bias broadcast over rows
    # dropout (eval mode) -> identity
    h = h + res_ref[...].astype(jnp.float32)        # residual add

    # One-pass LayerNorm statistics (var = E[h^2] - mean^2): both cross-lane
    # reductions read h directly, so they are independent on the XLU. All math
    # is f32; at BERT-scale magnitudes (|mean| ~ std ~ O(1)) cancellation is
    # not a concern. If reused where |mean| >> std, switch to a two-pass
    # (h - mean)^2 variance.
    s1 = jnp.sum(h, axis=-1, keepdims=True)
    s2 = jnp.sum(h * h, axis=-1, keepdims=True)
    mean = s1 * inv_hidden
    var = jnp.maximum(s2 * inv_hidden - mean * mean, 0.0)
    inv_std = lax.rsqrt(var + eps)

    y = (h - mean) * inv_std
    y = y * gamma_ref[...].astype(jnp.float32) + beta_ref[...].astype(jnp.float32)
    out_ref[...] = y.astype(out_ref.dtype)


def bert_output(hidden_states, input_tensor, w, b, gamma, beta, *,
                eps=1e-12, tile_m=None, compute_dtype=jnp.bfloat16,
                out_dtype=None):
    """hidden_states: [B, S, I], input_tensor: [B, S, H] -> [B, S, H].

    w is the Linear weight stored as [I, H] (i.e. W^T). Streaming operands and
    the weight are cast to `compute_dtype` (default bf16) before the call;
    accumulation and LayerNorm math stay f32 in-kernel. Pass
    compute_dtype=None to keep native input dtypes.
    """
    B, S, I = hidden_states.shape
    H = input_tensor.shape[-1]
    rows = B * S
    if out_dtype is None:
        out_dtype = hidden_states.dtype
    if compute_dtype is None:
        compute_dtype = hidden_states.dtype

    isz = lambda d: jnp.dtype(d).itemsize
    ic, io = isz(compute_dtype), isz(out_dtype)

    # Per-TensorCore VMEM; fall back to the smallest generation (v7x: 64 MiB).
    vmem_cap = 64 << 20
    try:
        vmem_cap = int(pltpu.get_tpu_info().vmem_capacity_bytes)
    except Exception:
        pass

    # ---- row-tile sizing ---------------------------------------------------
    sub_align = 16 if ic == 2 else (32 if ic == 1 else 8)   # sublane packing
    if tile_m is None:
        # v5e/v6e (128 MiB VMEM): large tiles toward the HBM roofline;
        # v7x (64 MiB VMEM): stay at 256.
        tile_m = 512 if vmem_cap >= (96 << 20) else 256
    if tile_m >= 256:
        tile_m = _round_up(tile_m, 256)   # full MXU passes (also /128 on v5e)
    else:
        tile_m = _round_up(tile_m, sub_align)
    tile_m = min(tile_m, _round_up(rows, sub_align))

    # Keep >= 2 grid steps when rows allow, so both v7x TensorCores get work.
    if rows >= 256 and pl.cdiv(rows, tile_m) < 2:
        tile_m = _round_up(pl.cdiv(rows, 2), sub_align)

    # ---- VMEM budget (counts the implicit f32 h / y intermediates) ----------
    def vmem_estimate(t):
        return (I * H * ic                    # resident weight (single buffer)
                + 3 * H * 4                   # bias / gamma / beta (f32)
                + 2 * t * I * ic              # x tiles (double-buffered)
                + 2 * t * H * ic              # residual tiles
                + 2 * t * H * io              # output tiles
                + 2 * t * H * 4)              # compiler-managed f32 h and y

    hard_cap = vmem_cap - (14 << 20)          # headroom for Mosaic scratch
    while tile_m > sub_align and vmem_estimate(tile_m) > int(0.85 * hard_cap):
        tile_m = max(sub_align, _round_up(tile_m // 2, sub_align))
    # TODO(synk): if I*H ever grows so the resident W (+ f32 h) cannot fit even
    # at the minimum tile, add a K grid axis with a pl.when-init f32 accumulator
    # instead of keeping W fully resident.

    grid_m = pl.cdiv(rows, tile_m)

    vmem_needed = vmem_estimate(tile_m)
    vmem_limit = (None if vmem_needed <= (28 << 20)
                  else min(int(vmem_needed * 1.2) + (2 << 20), hard_cap))

    # ---- operands ------------------------------------------------------------
    # No wrapper-side padding: rows are independent, so a ragged final block
    # (tile_m not dividing rows) is handled by Pallas boundary masking.
    x2 = hidden_states.reshape(rows, I).astype(compute_dtype)
    res2 = input_tensor.reshape(rows, H).astype(compute_dtype)
    w_c = w.astype(compute_dtype)
    b2 = b.reshape(1, H).astype(jnp.float32)
    gamma2 = gamma.reshape(1, H).astype(jnp.float32)
    beta2 = beta.reshape(1, H).astype(jnp.float32)

    resident = pl.Buffered(buffer_count=1)    # constant blocks: no double buffer

    cost = pl.CostEstimate(
        flops=2 * rows * I * H,
        transcendentals=0,
        bytes_accessed=(rows * I * ic + I * H * ic + rows * H * ic
                        + rows * H * io + 3 * H * 4))

    out2 = pl.pallas_call(
        functools.partial(_bert_output_kernel, eps=eps, inv_hidden=1.0 / H),
        out_shape=jax.ShapeDtypeStruct((rows, H), out_dtype),
        grid=(grid_m,),
        in_specs=[
            pl.BlockSpec((tile_m, I), lambda i: (i, 0)),                     # x
            pl.BlockSpec((I, H), lambda i: (0, 0), pipeline_mode=resident),  # W^T
            pl.BlockSpec((1, H), lambda i: (0, 0), pipeline_mode=resident),  # bias
            pl.BlockSpec((tile_m, H), lambda i: (i, 0)),                     # residual
            pl.BlockSpec((1, H), lambda i: (0, 0), pipeline_mode=resident),  # gamma
            pl.BlockSpec((1, H), lambda i: (0, 0), pipeline_mode=resident),  # beta
        ],
        out_specs=pl.BlockSpec((tile_m, H), lambda i: (i, 0)),
        compiler_params=pltpu.CompilerParams(
            dimension_semantics=("parallel",),
            vmem_limit_bytes=vmem_limit),
        cost_estimate=cost,
    )(x2, w_c, b2, res2, gamma2, beta2)

    return out2.reshape(B, S, H)


def _reference(hidden_states, input_tensor, w, b, gamma, beta, *, eps,
               compute_dtype):
    """Pure-JAX reference applying the same input casts as the kernel wrapper."""
    f32 = jnp.float32
    x = hidden_states.astype(compute_dtype).astype(f32)
    wc = w.astype(compute_dtype).astype(f32)
    r = input_tensor.astype(compute_dtype).astype(f32)
    h = jnp.einsum("bsi,ih->bsh", x, wc,
                   precision=lax.Precision.HIGHEST) + b.astype(f32)
    h = h + r
    mu = jnp.mean(h, axis=-1, keepdims=True)
    var = jnp.mean((h - mu) ** 2, axis=-1, keepdims=True)
    y = (h - mu) / jnp.sqrt(var + eps) * gamma.astype(f32) + beta.astype(f32)
    return y.astype(hidden_states.dtype)


if __name__ == "__main__":
    # Small config: batch=2, seq=8, intermediate_size=512, hidden_size=128
    # (hidden chosen as a lane-dense 128 so output stores are unmasked).
    B, S, I, H = 2, 8, 512, 128
    eps = 1e-12

    key = jax.random.PRNGKey(0)
    k1, k2, k3, k4, k5 = jax.random.split(key, 5)
    hidden_states = jax.random.normal(k1, (B, S, I), dtype=jnp.float32)
    input_tensor = jax.random.normal(k2, (B, S, H), dtype=jnp.float32)

    # Deterministic parameter init (Linear weight stored as [I, H] = W^T).
    w = jax.random.normal(k3, (I, H), dtype=jnp.float32) * (1.0 / jnp.sqrt(I))
    b = jax.random.normal(k4, (H,), dtype=jnp.float32) * 0.02
    gamma = jnp.ones((H,), dtype=jnp.float32) + 0.01 * jax.random.normal(
        k5, (H,), dtype=jnp.float32)
    beta = jnp.zeros((H,), dtype=jnp.float32)

    out = bert_output(hidden_states, input_tensor, w, b, gamma, beta, eps=eps)
    out = jax.block_until_ready(out)

    ref = _reference(hidden_states, input_tensor, w, b, gamma, beta, eps=eps,
                     compute_dtype=jnp.bfloat16)
    assert out.shape == (B, S, H)
    assert jnp.allclose(out, ref, atol=5e-3, rtol=5e-3), (
        float(jnp.max(jnp.abs(out - ref))))
    print("KERNEL_OK")
</pallas_src>

<mosaic_0001>
module attributes {stable_mosaic.version = 11 : i64} {
  func.func @_bert_output_kernel(%arg0: i32, %arg1: memref<16x512xbf16, #tpu.memory_space<vmem>>, %arg2: memref<512x128xbf16, #tpu.memory_space<vmem>>, %arg3: memref<1x128xf32, #tpu.memory_space<vmem>>, %arg4: memref<16x128xbf16, #tpu.memory_space<vmem>>, %arg5: memref<1x128xf32, #tpu.memory_space<vmem>>, %arg6: memref<1x128xf32, #tpu.memory_space<vmem>>, %arg7: memref<16x128xf32, #tpu.memory_space<vmem>>) attributes {dimension_semantics = [#tpu.dimension_semantics<parallel>], iteration_bounds = array<i64: 1>, scalar_prefetch = 0 : i64, scratch_operands = 0 : i64, tpu.core_type = #tpu.core_type<tc>, window_params = [{transform_indices = @transform_0, window_bounds = array<i64: 16, 512>}, {pipeline_mode = #tpu.pipeline_mode<synchronous>, transform_indices = @transform_1, window_bounds = array<i64: 512, 128>}, {pipeline_mode = #tpu.pipeline_mode<synchronous>, transform_indices = @transform_2, window_bounds = array<i64: 1, 128>}, {transform_indices = @transform_3, window_bounds = array<i64: 16, 128>}, {pipeline_mode = #tpu.pipeline_mode<synchronous>, transform_indices = @transform_4, window_bounds = array<i64: 1, 128>}, {pipeline_mode = #tpu.pipeline_mode<synchronous>, transform_indices = @transform_5, window_bounds = array<i64: 1, 128>}, {transform_indices = @transform_6, window_bounds = array<i64: 16, 128>}]} {
    %c0 = arith.constant 0 : index
    %c0_0 = arith.constant 0 : index
    %0 = vector.load %arg1[%c0, %c0_0] : memref<16x512xbf16, #tpu.memory_space<vmem>>, vector<16x512xbf16>
    %c0_1 = arith.constant 0 : index
    %c0_2 = arith.constant 0 : index
    %1 = vector.load %arg2[%c0_1, %c0_2] : memref<512x128xbf16, #tpu.memory_space<vmem>>, vector<512x128xbf16>
    %cst = arith.constant dense<0.000000e+00> : vector<16x128xf32>
    %2 = tpu.matmul %0, %1, %cst {dimension_numbers = #tpu.dot_dimension_numbers<[1], [0], [0], [1], [0, 0, 1, 1], [], []>} : vector<16x512xbf16>, vector<512x128xbf16>, vector<16x128xf32> -> vector<16x128xf32>
    %c0_3 = arith.constant 0 : index
    %c0_4 = arith.constant 0 : index
    %3 = vector.load %arg3[%c0_3, %c0_4] : memref<1x128xf32, #tpu.memory_space<vmem>>, vector<1x128xf32>
    %4 = vector.broadcast %3 : vector<1x128xf32> to vector<16x128xf32>
    %5 = arith.addf %2, %4 : vector<16x128xf32>
    %c0_5 = arith.constant 0 : index
    %c0_6 = arith.constant 0 : index
    %6 = vector.load %arg4[%c0_5, %c0_6] : memref<16x128xbf16, #tpu.memory_space<vmem>>, vector<16x128xbf16>
    %7 = arith.extf %6 : vector<16x128xbf16> to vector<16x128xf32>
    %8 = arith.addf %5, %7 : vector<16x128xf32>
    %cst_7 = arith.constant dense<0.000000e+00> : vector<16xf32>
    %9 = vector.multi_reduction <add>, %8, %cst_7 [1] : vector<16x128xf32> to vector<16xf32>
    %10 = vector.shape_cast %9 : vector<16xf32> to vector<16x1xf32>
    %11 = arith.mulf %8, %8 : vector<16x128xf32>
    %cst_8 = arith.constant dense<0.000000e+00> : vector<16xf32>
    %12 = vector.multi_reduction <add>, %11, %cst_8 [1] : vector<16x128xf32> to vector<16xf32>
    %13 = vector.shape_cast %12 : vector<16xf32> to vector<16x1xf32>
    %cst_9 = arith.constant 7.812500e-03 : f32
    %14 = vector.broadcast %cst_9 : f32 to vector<16x1xf32>
    %15 = arith.mulf %10, %14 : vector<16x1xf32>
    %cst_10 = arith.constant 7.812500e-03 : f32
    %16 = vector.broadcast %cst_10 : f32 to vector<16x1xf32>
    %17 = arith.mulf %13, %16 : vector<16x1xf32>
    %18 = arith.mulf %15, %15 : vector<16x1xf32>
    %19 = arith.subf %17, %18 : vector<16x1xf32>
    %cst_11 = arith.constant 0.000000e+00 : f32
    %20 = vector.broadcast %cst_11 : f32 to vector<16x1xf32>
    %21 = arith.maximumf %19, %20 : vector<16x1xf32>
    %cst_12 = arith.constant 9.99999996E-13 : f32
    %22 = vector.broadcast %cst_12 : f32 to vector<16x1xf32>
    %23 = arith.addf %21, %22 : vector<16x1xf32>
    %24 = math.rsqrt %23 : vector<16x1xf32>
    %25 = vector.broadcast %15 : vector<16x1xf32> to vector<16x128xf32>
    %26 = arith.subf %8, %25 : vector<16x128xf32>
    %27 = vector.broadcast %24 : vector<16x1xf32> to vector<16x128xf32>
    %28 = arith.mulf %26, %27 : vector<16x128xf32>
    %c0_13 = arith.constant 0 : index
    %c0_14 = arith.constant 0 : index
    %29 = vector.load %arg5[%c0_13, %c0_14] : memref<1x128xf32, #tpu.memory_space<vmem>>, vector<1x128xf32>
    %30 = vector.broadcast %29 : vector<1x128xf32> to vector<16x128xf32>
    %31 = arith.mulf %28, %30 : vector<16x128xf32>
    %c0_15 = arith.constant 0 : index
    %c0_16 = arith.constant 0 : index
    %32 = vector.load %arg6[%c0_15, %c0_16] : memref<1x128xf32, #tpu.memory_space<vmem>>, vector<1x128xf32>
    %33 = vector.broadcast %32 : vector<1x128xf32> to vector<16x128xf32>
    %34 = arith.addf %31, %33 : vector<16x128xf32>
    %c0_17 = arith.constant 0 : index
    %c0_18 = arith.constant 0 : index
    %35 = vector.load %arg7[%c0_17, %c0_18] : memref<16x128xf32, #tpu.memory_space<vmem>>, vector<16x128xf32>
    tpu.vector_store %arg7[%c0_17, %c0_18], %34 {strides = array<i32>} : memref<16x128xf32, #tpu.memory_space<vmem>>, vector<16x128xf32>,
    return
  }
  func.func @transform_0(%arg0: i32) -> (i32, i32) {
    %c0_i32 = arith.constant 0 : i32
    %c0_i32_0 = arith.constant 0 : i32
    return %arg0, %c0_i32 : i32, i32
  }
  func.func @transform_1(%arg0: i32) -> (i32, i32) {
    %c0_i32 = arith.constant 0 : i32
    %c0_i32_0 = arith.constant 0 : i32
    %c0_i32_1 = arith.constant 0 : i32
    return %c0_i32, %c0_i32_0 : i32, i32
  }
  func.func @transform_2(%arg0: i32) -> (i32, i32) {
    %c0_i32 = arith.constant 0 : i32
    %c0_i32_0 = arith.constant 0 : i32
    %c0_i32_1 = arith.constant 0 : i32
    return %c0_i32, %c0_i32_0 : i32, i32
  }
  func.func @transform_3(%arg0: i32) -> (i32, i32) {
    %c0_i32 = arith.constant 0 : i32
    %c0_i32_0 = arith.constant 0 : i32
    return %arg0, %c0_i32 : i32, i32
  }
  func.func @transform_4(%arg0: i32) -> (i32, i32) {
    %c0_i32 = arith.constant 0 : i32
    %c0_i32_0 = arith.constant 0 : i32
    %c0_i32_1 = arith.constant 0 : i32
    return %c0_i32, %c0_i32_0 : i32, i32
  }
  func.func @transform_5(%arg0: i32) -> (i32, i32) {
    %c0_i32 = arith.constant 0 : i32
    %c0_i32_0 = arith.constant 0 : i32
    %c0_i32_1 = arith.constant 0 : i32
    return %c0_i32, %c0_i32_0 : i32, i32
  }
  func.func @transform_6(%arg0: i32) -> (i32, i32) {
    %c0_i32 = arith.constant 0 : i32
    %c0_i32_0 = arith.constant 0 : i32
    return %arg0, %c0_i32 : i32, i32
  }
}

</mosaic_0001>

<llo_original>
// kernel: tpu_custom_call.1
$region0: #{tpu_custom_call.1}
  #allocation0 [shape = 'u32[]', space=smem, size = 0x4, offset = 0x4, fixed_abs, tag = 'smem constant byte address 0x4 - core index']
  #allocation1 [shape = 'u32[144,128]{1,0:T(1,128)}', space=vmem, size = 0x12000, scoped, tag = 'internal scratch']
  %s0 = inlined_call_operand.hbm [shape: bf16[16,512], index: 0, kind: input, shape index: {}]
  %s1 = inlined_call_operand.hbm [shape: bf16[512,128], index: 1, kind: input, shape index: {}]
  %s2 = inlined_call_operand.vmem [shape: f32[1,128], index: 2, kind: input, shape index: {}]
  %s3 = inlined_call_operand.vmem [shape: bf16[16,128], index: 3, kind: input, shape index: {}]
  %s4 = inlined_call_operand.vmem [shape: f32[1,128], index: 4, kind: input, shape index: {}]
  %s5 = inlined_call_operand.vmem [shape: f32[1,128], index: 5, kind: input, shape index: {}]
  %s6 = inlined_call_operand.hbm [shape: f32[16,128], index: 6, kind: output, shape index: {}]
  %s7 = sld [smem:[#allocation0]]
  $region42: #{tpu_custom_call.1} parent=0
    _
  %s9 = ssub.s32 1, %s7
  %s10 = scalar_select 0, %s9, %s7
  $region1: #{tpu_custom_call.1} parent=0
    #allocation2 [shape = 'u8[16384]{0}', space=vmem, size = 0x4000, scoped, tag = 'input window, operand 0, single buffered']
    #allocation3 [shape = 's32[1]{0}', space=sflag, size = 0x4, scoped, tag = 'scoped memory for tpu_custom_call.1']
    #allocation4 [shape = 's32[1]{0}', space=sflag, size = 0x4, scoped, tag = 'scoped memory for tpu_custom_call.1']
    #allocation5 [shape = 'u8[131072]{0}', space=vmem, size = 0x20000, scoped, tag = 'input window, operand 1, single buffered']
    #allocation6 [shape = 's32[1]{0}', space=sflag, size = 0x4, scoped, tag = 'scoped memory for tpu_custom_call.1']
    #allocation7 [shape = 'u8[8192]{0}', space=vmem, size = 0x2000, scoped, tag = 'output window, operand 0, single buffered']
    %11 = vsyncpa [#allocation3], 0
    %12 = vsyncpa [#allocation6], 0
    %13 = vsyncpa [#allocation4], 0
    // Predicated region
    $region2: #{tpu_custom_call.1} parent=1 // pred_check
      _
    $region3: #{tpu_custom_call.1} parent=1 // pred_check_branch
      %15 = sbr.rel (0) target = $region5
    $region4: #{tpu_custom_call.1} parent=1 // pred_region
      %s17 = ssub.s32 512, 512
      %18 = vsyncadd [#allocation3], %s17
      %s19 = sshll.u32 [#allocation2], 4
      %s20 = int_to_ptr.vmem [resolvable:$true] %s19
      %25 = dma.hbm_to_vmem [thread:$0]  %s0, 512, %s20, [#allocation3], 256, 256, 16
    $region5: #{tpu_custom_call.1} parent=1 // pred_fallthru
      _
    // Predicated region
    $region6: #{tpu_custom_call.1} parent=1 // pred_check
      _
    $region7: #{tpu_custom_call.1} parent=1 // pred_check_branch
      %27 = sbr.rel (0) target = $region9
    $region8: #{tpu_custom_call.1} parent=1 // pred_region
      %s29 = ssub.s32 4096, 4096
      %30 = vsyncadd [#allocation6], %s29
      %s31 = sshll.u32 [#allocation5], 4
      %s32 = int_to_ptr.vmem [resolvable:$true] %s31
      %37 = dma.hbm_to_vmem [thread:$0]  %s1, 4096, %s32, [#allocation6], 64, 64, 4
    $region9: #{tpu_custom_call.1} parent=1 // pred_fallthru
      _
    // Predicated region
    $region10: #{tpu_custom_call.1} parent=1 // pred_check
      _
    $region11: #{tpu_custom_call.1} parent=1 // pred_check_branch
      %39 = sbr.rel (0) target = $region13
    $region12: #{tpu_custom_call.1} parent=1 // pred_region
      _
    $region13: #{tpu_custom_call.1} parent=1 // pred_fallthru
      _
    // Predicated region
    $region14: #{tpu_custom_call.1} parent=1 // pred_check
      _
    $region15: #{tpu_custom_call.1} parent=1 // pred_check_branch
      %41 = sbr.rel (0) target = $region17
    $region16: #{tpu_custom_call.1} parent=1 // pred_region
      _
    $region17: #{tpu_custom_call.1} parent=1 // pred_fallthru
      _
    // Predicated region
    $region18: #{tpu_custom_call.1} parent=1 // pred_check
      _
    $region19: #{tpu_custom_call.1} parent=1 // pred_check_branch
      %43 = sbr.rel (0) target = $region21
    $region20: #{tpu_custom_call.1} parent=1 // pred_region
      _
    $region21: #{tpu_custom_call.1} parent=1 // pred_fallthru
      _
    // Predicated region
    $region22: #{tpu_custom_call.1} parent=1 // pred_check
      _
    $region23: #{tpu_custom_call.1} parent=1 // pred_check_branch
      %45 = sbr.rel (0) target = $region25
    $region24: #{tpu_custom_call.1} parent=1 // pred_region
      _
    $region25: #{tpu_custom_call.1} parent=1 // pred_fallthru
      _
    // Predicated region
    $region26: #{tpu_custom_call.1} parent=1 // pred_check
      _
    $region27: #{tpu_custom_call.1} parent=1 // pred_check_branch
      %47 = sbr.rel (0) target = $region29
    $region28: #{tpu_custom_call.1} parent=1 // pred_region
      %48 = dma.done [#allocation3], 512
    $region29: #{tpu_custom_call.1} parent=1 // pred_fallthru
      _
    // Predicated region
    $region30: #{tpu_custom_call.1} parent=1 // pred_check
      _
    $region31: #{tpu_custom_call.1} parent=1 // pred_check_branch
      %50 = sbr.rel (0) target = $region33
    $region32: #{tpu_custom_call.1} parent=1 // pred_region
      %51 = dma.done [#allocation6], 4096
    $region33: #{tpu_custom_call.1} parent=1 // pred_fallthru
      _
    %v53 = vld [vmem:[#allocation2] sm:$0xff]
    %v54 = vld [vmem:[#allocation2 + $0x8] sm:$0xff]
    %v55 = vld [vmem:[#allocation2 + $0x10] sm:$0xff]
    %v56 = vld [vmem:[#allocation2 + $0x18] sm:$0xff]
    %v57 = vld [vmem:[#allocation5] sm:$0xf]
    %v58 = vld [vmem:[#allocation5 + $0x4] sm:$0xf]
    %v59 = vld [vmem:[#allocation5 + $0x8] sm:$0xf]
    %v60 = vld [vmem:[#allocation5 + $0xc] sm:$0xf]
    %v61 = vld [vmem:[#allocation5 + $0x10] sm:$0xf]
    %v62 = vld [vmem:[#allocation5 + $0x14] sm:$0xf]
    %v63 = vld [vmem:[#allocation5 + $0x18] sm:$0xf]
    %v64 = vld [vmem:[#allocation5 + $0x1c] sm:$0xf]
    %v65 = vld [vmem:[#allocation5 + $0x20] sm:$0xf]
    %v66 = vld [vmem:[#allocation5 + $0x24] sm:$0xf]
    %v67 = vld [vmem:[#allocation5 + $0x28] sm:$0xf]
    %v68 = vld [vmem:[#allocation5 + $0x2c] sm:$0xf]
    %v69 = vld [vmem:[#allocation5 + $0x30] sm:$0xf]
    %v70 = vld [vmem:[#allocation5 + $0x34] sm:$0xf]
    %v71 = vld [vmem:[#allocation5 + $0x38] sm:$0xf]
    %v72 = vld [vmem:[#allocation5 + $0x3c] sm:$0xf]
    %v73 = vld [vmem:[#allocation5 + $0x40] sm:$0xf]
    %v74 = vld [vmem:[#allocation5 + $0x44] sm:$0xf]
    %v75 = vld [vmem:[#allocation5 + $0x48] sm:$0xf]
    %v76 = vld [vmem:[#allocation5 + $0x4c] sm:$0xf]
    %v77 = vld [vmem:[#allocation5 + $0x50] sm:$0xf]
    %v78 = vld [vmem:[#allocation5 + $0x54] sm:$0xf]
    %v79 = vld [vmem:[#allocation5 + $0x58] sm:$0xf]
    %v80 = vld [vmem:[#allocation5 + $0x5c] sm:$0xf]
    %v81 = vld [vmem:[#allocation5 + $0x60] sm:$0xf]
    %v82 = vld [vmem:[#allocation5 + $0x64] sm:$0xf]
    %v83 = vld [vmem:[#allocation5 + $0x68] sm:$0xf]
    %v84 = vld [vmem:[#allocation5 + $0x6c] sm:$0xf]
    %v85 = vld [vmem:[#allocation5 + $0x70] sm:$0xf]
    %v86 = vld [vmem:[#allocation5 + $0x74] sm:$0xf]
    %v87 = vld [vmem:[#allocation5 + $0x78] sm:$0xf]
    %v88 = vld [vmem:[#allocation5 + $0x7c] sm:$0xf]
    %v89 = vld [vmem:[#allocation5 + $0x80] sm:$0xf]
    %v90 = vld [vmem:[#allocation5 + $0x84] sm:$0xf]
    %v91 = vld [vmem:[#allocation5 + $0x88] sm:$0xf]
    %v92 = vld [vmem:[#allocation5 + $0x8c] sm:$0xf]
    %v93 = vld [vmem:[#allocation5 + $0x90] sm:$0xf]
    %v94 = vld [vmem:[#allocation5 + $0x94] sm:$0xf]
    %v95 = vld [vmem:[#allocation5 + $0x98] sm:$0xf]
    %v96 = vld [vmem:[#allocation5 + $0x9c] sm:$0xf]
    %v97 = vld [vmem:[#allocation5 + $0xa0] sm:$0xf]
    %v98 = vld [vmem:[#allocation5 + $0xa4] sm:$0xf]
    %v99 = vld [vmem:[#allocation5 + $0xa8] sm:$0xf]
    %v100 = vld [vmem:[#allocation5 + $0xac] sm:$0xf]
    %v101 = vld [vmem:[#allocation5 + $0xb0] sm:$0xf]
    %v102 = vld [vmem:[#allocation5 + $0xb4] sm:$0xf]
    %v103 = vld [vmem:[#allocation5 + $0xb8] sm:$0xf]
    %v104 = vld [vmem:[#allocation5 + $0xbc] sm:$0xf]
    %v105 = vld [vmem:[#allocation5 + $0xc0] sm:$0xf]
    %v106 = vld [vmem:[#allocation5 + $0xc4] sm:$0xf]
    %v107 = vld [vmem:[#allocation5 + $0xc8] sm:$0xf]
    %v108 = vld [vmem:[#allocation5 + $0xcc] sm:$0xf]
    %v109 = vld [vmem:[#allocation5 + $0xd0] sm:$0xf]
    %v110 = vld [vmem:[#allocation5 + $0xd4] sm:$0xf]
    %v111 = vld [vmem:[#allocation5 + $0xd8] sm:$0xf]
    %v112 = vld [vmem:[#allocation5 + $0xdc] sm:$0xf]
    %v113 = vld [vmem:[#allocation5 + $0xe0] sm:$0xf]
    %v114 = vld [vmem:[#allocation5 + $0xe4] sm:$0xf]
    %v115 = vld [vmem:[#allocation5 + $0xe8] sm:$0xf]
    %v116 = vld [vmem:[#allocation5 + $0xec] sm:$0xf]
    %v117 = vld [vmem:[#allocation5 + $0xf0] sm:$0xf]
    %v118 = vld [vmem:[#allocation5 + $0xf4] sm:$0xf]
    %v119 = vld [vmem:[#allocation5 + $0xf8] sm:$0xf]
    %v120 = vld [vmem:[#allocation5 + $0xfc] sm:$0xf]
    %v121 = vld [vmem:[%s2] sm:$0x1]
    %v123 = vlaneseq
    %v124 = vshrl.u32 %v123, 7
    %v125 = vsub.s32 0, %v124
    %v126 = vrot.slane %v121, %v125
    %v132 = vunpack.c.l.b16 %v53
    %v133 = vunpack.c.h.b16 %v53
    %v134 = vunpack.c.l.b16 %v54
    %v135 = vunpack.c.h.b16 %v54
    %v136 = vunpack.c.l.b16 %v55
    %v137 = vunpack.c.h.b16 %v55
    %v138 = vunpack.c.l.b16 %v56
    %v139 = vunpack.c.h.b16 %v56
    %v140 = vpack.c.b16 %v136, %v132
    %v141 = vpack.c.b16 %v137, %v133
    %v142 = vpack.c.b16 %v138, %v134
    %v143 = vpack.c.b16 %v139, %v135
    %v212 = vunpack.c.l.b16 %v57
    %v213 = vunpack.c.l.b16 %v58
    %v214 = vunpack.c.l.b16 %v59
    %v215 = vunpack.c.l.b16 %v60
    %v216 = vunpack.c.l.b16 %v61
    %v217 = vunpack.c.l.b16 %v62
    %v218 = vunpack.c.l.b16 %v63
    %v219 = vunpack.c.l.b16 %v64
    %v220 = vunpack.c.l.b16 %v65
    %v221 = vunpack.c.l.b16 %v66
    %v222 = vunpack.c.l.b16 %v67
    %v223 = vunpack.c.l.b16 %v68
    %v224 = vunpack.c.l.b16 %v69
    %v225 = vunpack.c.l.b16 %v70
    %v226 = vunpack.c.l.b16 %v71
    %v227 = vunpack.c.l.b16 %v72
    %v228 = vunpack.c.l.b16 %v73
    %v229 = vunpack.c.l.b16 %v74
    %v230 = vunpack.c.l.b16 %v75
    %v231 = vunpack.c.l.b16 %v76
    %v232 = vunpack.c.l.b16 %v77
    %v233 = vunpack.c.l.b16 %v78
    %v234 = vunpack.c.l.b16 %v79
    %v235 = vunpack.c.l.b16 %v80
    %v236 = vunpack.c.l.b16 %v81
    %v237 = vunpack.c.l.b16 %v82
    %v238 = vunpack.c.l.b16 %v83
    %v239 = vunpack.c.l.b16 %v84
    %v240 = vunpack.c.l.b16 %v85
    %v241 = vunpack.c.l.b16 %v86
    %v242 = vunpack.c.l.b16 %v87
    %v243 = vunpack.c.l.b16 %v88
    %v244 = vunpack.c.l.b16 %v89
    %v245 = vunpack.c.l.b16 %v90
    %v246 = vunpack.c.l.b16 %v91
    %v247 = vunpack.c.l.b16 %v92
    %v248 = vunpack.c.l.b16 %v93
    %v249 = vunpack.c.l.b16 %v94
    %v250 = vunpack.c.l.b16 %v95
    %v251 = vunpack.c.l.b16 %v96
    %v252 = vunpack.c.l.b16 %v97
    %v253 = vunpack.c.l.b16 %v98
    %v254 = vunpack.c.l.b16 %v99
    %v255 = vunpack.c.l.b16 %v100
    %v256 = vunpack.c.l.b16 %v101
    %v257 = vunpack.c.l.b16 %v102
    %v258 = vunpack.c.l.b16 %v103
    %v259 = vunpack.c.l.b16 %v104
    %v260 = vunpack.c.l.b16 %v105
    %v261 = vunpack.c.l.b16 %v106
    %v262 = vunpack.c.l.b16 %v107
    %v263 = vunpack.c.l.b16 %v108
    %v264 = vunpack.c.l.b16 %v109
    %v265 = vunpack.c.l.b16 %v110
    %v266 = vunpack.c.l.b16 %v111
    %v267 = vunpack.c.l.b16 %v112
    %v268 = vunpack.c.l.b16 %v113
    %v269 = vunpack.c.l.b16 %v114
    %v270 = vunpack.c.l.b16 %v115
    %v271 = vunpack.c.l.b16 %v116
    %v272 = vunpack.c.l.b16 %v117
    %v273 = vunpack.c.l.b16 %v118
    %v274 = vunpack.c.l.b16 %v119
    %v275 = vunpack.c.l.b16 %v120
    %v276 = vpack.c.b16 %v213, %v212
    %v277 = vpack.c.b16 %v215, %v214
    %v278 = vpack.c.b16 %v217, %v216
    %v279 = vpack.c.b16 %v219, %v218
    %v280 = vpack.c.b16 %v221, %v220
    %v281 = vpack.c.b16 %v223, %v222
    %v282 = vpack.c.b16 %v225, %v224
    %v283 = vpack.c.b16 %v227, %v226
    %v284 = vpack.c.b16 %v229, %v228
    %v285 = vpack.c.b16 %v231, %v230
    %v286 = vpack.c.b16 %v233, %v232
    %v287 = vpack.c.b16 %v235, %v234
    %v288 = vpack.c.b16 %v237, %v236
    %v289 = vpack.c.b16 %v239, %v238
    %v290 = vpack.c.b16 %v241, %v240
    %v291 = vpack.c.b16 %v243, %v242
    %v292 = vpack.c.b16 %v245, %v244
    %v293 = vpack.c.b16 %v247, %v246
    %v294 = vpack.c.b16 %v249, %v248
    %v295 = vpack.c.b16 %v251, %v250
    %v296 = vpack.c.b16 %v253, %v252
    %v297 = vpack.c.b16 %v255, %v254
    %v298 = vpack.c.b16 %v257, %v256
    %v299 = vpack.c.b16 %v259, %v258
    %v300 = vpack.c.b16 %v261, %v260
    %v301 = vpack.c.b16 %v263, %v262
    %v302 = vpack.c.b16 %v265, %v264
    %v303 = vpack.c.b16 %v267, %v266
    %v304 = vpack.c.b16 %v269, %v268
    %v305 = vpack.c.b16 %v271, %v270
    %v306 = vpack.c.b16 %v273, %v272
    %v307 = vpack.c.b16 %v275, %v274
    %340 = vmatprep.subr.bf16.mxu0 0
    %341 = vmatpush1.bf16.msra.mxu0 %v276
    %342 = vmatprep.subr.bf16.mxu0 0
    %343 = vmatpush1.bf16.msra.mxu0 %v277
    %344 = vmatprep.subr.bf16.mxu0 0
    %345 = vmatpush1.bf16.msra.mxu0 %v278
    %346 = vmatprep.subr.bf16.mxu0 0
    %347 = vmatpush1.bf16.msra.mxu0 %v279
    %348 = vmatprep.subr.bf16.mxu0 0
    %349 = vmatpush1.bf16.msra.mxu0 %v280
    %350 = vmatprep.subr.bf16.mxu0 0
    %351 = vmatpush1.bf16.msra.mxu0 %v281
    %352 = vmatprep.subr.bf16.mxu0 0
    %353 = vmatpush1.bf16.msra.mxu0 %v282
    %354 = vmatprep.subr.bf16.mxu0 0
    %355 = vmatpush1.bf16.msra.mxu0 %v283
    %356 = vmatprep.subr.bf16.mxu0 0
    %357 = vmatpush1.bf16.msra.mxu0 %v284
    %358 = vmatprep.subr.bf16.mxu0 0
    %359 = vmatpush1.bf16.msra.mxu0 %v285
    %360 = vmatprep.subr.bf16.mxu0 0
    %361 = vmatpush1.bf16.msra.mxu0 %v286
    %362 = vmatprep.subr.bf16.mxu0 0
    %363 = vmatpush1.bf16.msra.mxu0 %v287
    %364 = vmatprep.subr.bf16.mxu0 0
    %365 = vmatpush1.bf16.msra.mxu0 %v288
    %366 = vmatprep.subr.bf16.mxu0 0
    %367 = vmatpush1.bf16.msra.mxu0 %v289
    %368 = vmatprep.subr.bf16.mxu0 0
    %369 = vmatpush1.bf16.msra.mxu0 %v290
    %370 = vmatprep.subr.bf16.mxu0 0
    %371 = vmatpush1.bf16.msra.mxu0 %v291
    %372 = vmatprep.mubr.bf16.mxu0 %v141
    %373 = vmatmul.mubr.bf16.gmra.mrb[0].mxu0 %v140
    %v374 = vpop.f32.mrb[0].mxu0
    %v375 = vadd.f32 %v126, %v374
    %v376 = vpop.f32.mrb[0].mxu0
    %v377 = vpop.f32.mrb[0].mxu0
    %v378 = vadd.f32 %v126, %v377
    %v379 = vpop.f32.mrb[0].mxu0
    %380 = vdwg.mxu0
    %381 = vmatprep.subr.bf16.mxu0 0
    %382 = vmatpush1.bf16.msra.mxu0 %v292
    %383 = vmatprep.subr.bf16.mxu0 0
    %384 = vmatpush1.bf16.msra.mxu0 %v293
    %385 = vmatprep.subr.bf16.mxu0 0
    %386 = vmatpush1.bf16.msra.mxu0 %v294
    %387 = vmatprep.subr.bf16.mxu0 0
    %388 = vmatpush1.bf16.msra.mxu0 %v295
    %389 = vmatprep.subr.bf16.mxu0 0
    %390 = vmatpush1.bf16.msra.mxu0 %v296
    %391 = vmatprep.subr.bf16.mxu0 0
    %392 = vmatpush1.bf16.msra.mxu0 %v297
    %393 = vmatprep.subr.bf16.mxu0 0
    %394 = vmatpush1.bf16.msra.mxu0 %v298
    %395 = vmatprep.subr.bf16.mxu0 0
    %396 = vmatpush1.bf16.msra.mxu0 %v299
    %397 = vmatprep.subr.bf16.mxu0 0
    %398 = vmatpush1.bf16.msra.mxu0 %v300
    %399 = vmatprep.subr.bf16.mxu0 0
    %400 = vmatpush1.bf16.msra.mxu0 %v301
    %401 = vmatprep.subr.bf16.mxu0 0
    %402 = vmatpush1.bf16.msra.mxu0 %v302
    %403 = vmatprep.subr.bf16.mxu0 0
    %404 = vmatpush1.bf16.msra.mxu0 %v303
    %405 = vmatprep.subr.bf16.mxu0 0
    %406 = vmatpush1.bf16.msra.mxu0 %v304
    %407 = vmatprep.subr.bf16.mxu0 0
    %408 = vmatpush1.bf16.msra.mxu0 %v305
    %409 = vmatprep.subr.bf16.mxu0 0
    %410 = vmatpush1.bf16.msra.mxu0 %v306
    %411 = vmatprep.subr.bf16.mxu0 0
    %412 = vmatpush1.bf16.msra.mxu0 %v307
    %413 = vmatprep.mubr.bf16.mxu0 %v143
    %414 = vmatmul.mubr.bf16.gmra.mrb[0].mxu0 %v142
    %v415 = vpop.f32.mrb[0].mxu0
    %v416 = vadd.f32 %v375, %v415
    %v417 = vpop.f32.mrb[0].mxu0
    %v418 = vpop.f32.mrb[0].mxu0
    %v419 = vadd.f32 %v378, %v418
    %v420 = vpop.f32.mrb[0].mxu0
    %421 = vdwg.mxu0
    %v422 = vld [vmem:[%s3] sm:$0xf]
    %v423 = vld [vmem:[%s3 + $0x4] sm:$0xf]
    %v424 = vunpack.c.l.bf16 %v422
    %v425 = vunpack.c.l.bf16 %v423
    %v426 = vadd.f32 %v416, %v424
    %v427 = vadd.f32 %v419, %v425
    %428 = vadd.xlane.f32.xlu0 %v426
    %v429 = vpop.xlane.xlu0 %428
    %430 = vadd.xlane.f32.xlu0 %v427
    %v431 = vpop.xlane.xlu0 %430
    %v432 = vmul.f32 %v426, %v426
    %v433 = vmul.f32 %v427, %v427
    %434 = vadd.xlane.f32.xlu0 %v432
    %v435 = vpop.xlane.xlu0 %434
    %436 = vadd.xlane.f32.xlu0 %v433
    %v437 = vpop.xlane.xlu0 %436
    %v438 = vmul.f32 %v429, 0.0078125
    %v439 = vmul.f32 %v431, 0.0078125
    %v440 = vmul.f32 %v435, 0.0078125
    %v441 = vmul.f32 %v437, 0.0078125
    %v442 = vmul.f32 %v438, %v438
    %v443 = vmul.f32 %v439, %v439
    %v444 = vsub.f32 %v440, %v442
    %v445 = vsub.f32 %v441, %v443
    %v446 = vmax.f32 %v444, 0.0
    %v447 = vmax.f32 %v445, 0.0
    %v448 = vadd.f32 %v446, 1e-12
    %v449 = vadd.f32 %v447, 1e-12
    %v450 = vrsqrt.pop %v448
    %v451 = vrsqrt.pop %v449
    %v452 = vsub.f32 %v426, %v438
    %v453 = vsub.f32 %v427, %v439
    %v454 = vmul.f32 %v452, %v450
    %v455 = vmul.f32 %v453, %v451
    %v456 = vld [vmem:[%s4] sm:$0x1]
    %v458 = vlaneseq
    %v459 = vshrl.u32 %v458, 7
    %v460 = vsub.s32 0, %v459
    %v461 = vrot.slane %v456, %v460
    %v463 = vmul.f32 %v454, %v461
    %v464 = vmul.f32 %v455, %v461
    %v465 = vld [vmem:[%s5] sm:$0x1]
    %v467 = vlaneseq
    %v468 = vshrl.u32 %v467, 7
    %v469 = vsub.s32 0, %v468
    %v470 = vrot.slane %v465, %v469
    %v472 = vadd.f32 %v463, %v470
    %v473 = vadd.f32 %v464, %v470
    %474 = vst [vmem:[#allocation7] sm:$0xff] %v472
    %475 = vst [vmem:[#allocation7 + $0x8] sm:$0xff] %v473
    // Predicated region
    $region34: #{tpu_custom_call.1} parent=1 // pred_check
      _
    $region35: #{tpu_custom_call.1} parent=1 // pred_check_branch
      %477 = sbr.rel (0) target = $region37
    $region36: #{tpu_custom_call.1} parent=1 // pred_region
      %s479 = ssub.s32 256, 256
      %480 = vsyncadd [#allocation4], %s479
      %s481 = sshll.u32 [#allocation7], 4
      %s482 = int_to_ptr.vmem [resolvable:$true] %s481
      %487 = dma.vmem_to_hbm [thread:$0]  %s482, 256, %s6, [#allocation4], 128, 128, 8
    $region37: #{tpu_custom_call.1} parent=1 // pred_fallthru
      _
    // Predicated region
    $region38: #{tpu_custom_call.1} parent=1 // pred_check
      _
    $region39: #{tpu_custom_call.1} parent=1 // pred_check_branch
      %489 = sbr.rel (0) target = $region41
    $region40: #{tpu_custom_call.1} parent=1 // pred_region
      %490 = dma.done [#allocation4], 256
    $region41: #{tpu_custom_call.1} parent=1 // pred_fallthru
      _
    %491 = vsyncpa [#allocation3], 1
    %492 = vsyncpa [#allocation6], 1
    %493 = vsyncpa [#allocation4], 1

</llo_original>
